<compile_context>
chip_gen: v5e
topology: v5e:2x2
jax: 0.10.0
libtpu: 0.0.40
codegen_flags: <defaults>
</compile_context>

<pallas_src>
import jax
import jax.numpy as jnp
from jax.experimental import pallas as pl
from jax.experimental.pallas import tpu as pltpu

_MiB = 1024 * 1024


def _tpu_geometry():
    """Returns (vmem_capacity_bytes, assumed tensorcores per chip)."""
    try:
        cap = int(pltpu.get_tpu_info().vmem_capacity_bytes)
    except Exception:
        cap = 64 * _MiB  # conservative (v7x-sized) fallback
    # v7x exposes 64 MiB VMEM per TensorCore and has 2 TCs; v5e/v6e expose
    # 128 MiB with a single TC.  Use VMEM size as the generation signal.
    num_tc = 2 if cap <= 64 * _MiB else 1
    return cap, num_tc


def _make_se_kernel(inv_hw):
    """inv_hw: Python float 1/(H*W) baked in as a compile-time constant."""

    def se_kernel(x_ref, w1t_ref, b1_ref, w2t_ref, b2_ref, o_ref):
        x = x_ref[...]                                     # (b_blk, C, HW)
        # --- squeeze: global average pool (per-row reduction, f32 accum) ---
        p = jnp.sum(x.astype(jnp.float32), axis=2) * inv_hw    # (b_blk, C)
        # --- excitation, batched over the block's batch rows ---
        h = jnp.dot(p, w1t_ref[...],
                    preferred_element_type=jnp.float32) + b1_ref[...]
        h = jnp.maximum(h, 0.0)                            # (b_blk, hid)
        y = jnp.dot(h, w2t_ref[...],
                    preferred_element_type=jnp.float32) + b2_ref[...]
        y = jax.nn.sigmoid(y)                              # (b_blk, C) f32
        # --- scale (lane-dense store in the I/O dtype) ---
        o_ref[...] = (x * y.astype(x.dtype)[:, :, None]).astype(o_ref.dtype)

    return se_kernel


@jax.jit
def se_layer(x, w1, b1, w2, b2):
    """x: (B, C, H, W) f32/bf16.  w1: (hid, C), b1: (hid,), w2: (C, hid), b2: (C,)."""
    B, C, H, W = x.shape
    HW = H * W
    hid = w1.shape[0]

    # Metadata-only view: (B, C, H, W) -> (B, C, HW).  No pad, no copy.
    xr = x.reshape(B, C, HW)

    vmem_cap, num_tc = _tpu_geometry()

    # Per-block x-tile budget; input + output tiles are each double-buffered
    # so the pipeline footprint is ~4x this.  Bigger blocks on 128 MiB chips.
    block_budget = 8 * _MiB if vmem_cap >= 128 * _MiB else 4 * _MiB
    bytes_per_image = C * HW * x.dtype.itemsize
    b_blk = max(1, block_budget // max(bytes_per_image, 1))
    b_blk = min(b_blk, B)
    # Only split small batches into >=2 blocks on the 2-TensorCore part so
    # both cores get work; on single-TC chips one maximal block is better.
    if num_tc >= 2 and B >= 2:
        b_blk = min(b_blk, pl.cdiv(B, 2))
    grid_steps = pl.cdiv(B, b_blk)       # ragged last block if b_blk !| B

    # Pre-transpose weights once in the wrapper; biases as (1, n) rows; the
    # excitation always runs in f32 regardless of the I/O dtype.
    w1t = w1.T.astype(jnp.float32)                  # (C, hid)
    w2t = w2.T.astype(jnp.float32)                  # (hid, C)
    b1r = b1.reshape(1, hid).astype(jnp.float32)
    b2r = b2.reshape(1, C).astype(jnp.float32)

    # VMEM limit sized to the actual footprint (+headroom), capped well below
    # the physical capacity of the generation we're on.
    block_bytes = b_blk * bytes_per_image
    weight_bytes = (2 * C * hid + hid + C) * 4
    footprint = 4 * block_bytes + 2 * weight_bytes
    vmem_limit = int(min(max(footprint + 4 * _MiB, 16 * _MiB),
                         (vmem_cap * 3) // 4))

    out = pl.pallas_call(
        _make_se_kernel(1.0 / HW),
        out_shape=jax.ShapeDtypeStruct((B, C, HW), x.dtype),
        grid=(grid_steps,),
        in_specs=[
            pl.BlockSpec((b_blk, C, HW), lambda i: (i, 0, 0)),
            pl.BlockSpec((C, hid), lambda i: (0, 0)),
            pl.BlockSpec((1, hid), lambda i: (0, 0)),
            pl.BlockSpec((hid, C), lambda i: (0, 0)),
            pl.BlockSpec((1, C), lambda i: (0, 0)),
        ],
        out_specs=pl.BlockSpec((b_blk, C, HW), lambda i: (i, 0, 0)),
        compiler_params=pltpu.CompilerParams(
            dimension_semantics=("parallel",),
            vmem_limit_bytes=vmem_limit,
        ),
    )(xr, w1t, b1r, w2t, b2r)

    # Metadata-only reshape back to NCHW.
    return out.reshape(B, C, H, W)


def se_reference(x, w1, b1, w2, b2):
    """Pure-JAX reference matching PyTorch SELayer.forward."""
    p = jnp.mean(x, axis=(2, 3))                        # (B, C)
    h = jnp.maximum(p @ w1.T + b1, 0.0)                 # (B, hid)
    y = jax.nn.sigmoid(h @ w2.T + b2)                   # (B, C)
    return x * y[:, :, None, None]


if __name__ == "__main__":
    # Small shapes; odd batch + HW not a multiple of 128 exercise the ragged
    # batch block and the ragged lane edge (no padding copies anywhere).
    B, C, H, W = 5, 32, 12, 12
    reduction = 4
    hid = C // reduction

    key = jax.random.PRNGKey(0)
    kx, k1, k2, k3, k4 = jax.random.split(key, 5)

    x = jax.random.normal(kx, (B, C, H, W), dtype=jnp.float32)
    # Deterministic synthetic parameters (no checkpoint load).
    w1 = jax.random.normal(k1, (hid, C), dtype=jnp.float32) * 0.1
    b1 = jax.random.normal(k2, (hid,), dtype=jnp.float32) * 0.1
    w2 = jax.random.normal(k3, (C, hid), dtype=jnp.float32) * 0.1
    b2 = jax.random.normal(k4, (C,), dtype=jnp.float32) * 0.1

    ref = se_reference(x, w1, b1, w2, b2)

    out = se_layer(x, w1, b1, w2, b2)
    out = jax.block_until_ready(out)

    assert out.shape == (B, C, H, W)
    assert jnp.allclose(out, ref, atol=1e-5, rtol=1e-5), "mismatch vs reference"

    print("KERNEL_OK")
</pallas_src>

<mosaic_0001>
module attributes {stable_mosaic.version = 11 : i64} {
  func.func @se_kernel(%arg0: i32, %arg1: memref<3x32x144xf32, #tpu.memory_space<vmem>>, %arg2: memref<32x8xf32, #tpu.memory_space<vmem>>, %arg3: memref<1x8xf32, #tpu.memory_space<vmem>>, %arg4: memref<8x32xf32, #tpu.memory_space<vmem>>, %arg5: memref<1x32xf32, #tpu.memory_space<vmem>>, %arg6: memref<3x32x144xf32, #tpu.memory_space<vmem>>) attributes {dimension_semantics = [#tpu.dimension_semantics<parallel>], iteration_bounds = array<i64: 2>, scalar_prefetch = 0 : i64, scratch_operands = 0 : i64, tpu.core_type = #tpu.core_type<tc>, window_params = [{transform_indices = @transform_0, window_bounds = array<i64: 3, 32, 144>}, {pipeline_mode = #tpu.pipeline_mode<synchronous>, transform_indices = @transform_1, window_bounds = array<i64: 32, 8>}, {pipeline_mode = #tpu.pipeline_mode<synchronous>, transform_indices = @transform_2, window_bounds = array<i64: 1, 8>}, {pipeline_mode = #tpu.pipeline_mode<synchronous>, transform_indices = @transform_3, window_bounds = array<i64: 8, 32>}, {pipeline_mode = #tpu.pipeline_mode<synchronous>, transform_indices = @transform_4, window_bounds = array<i64: 1, 32>}, {transform_indices = @transform_5, window_bounds = array<i64: 3, 32, 144>}]} {
    %c0 = arith.constant 0 : index
    %c0_0 = arith.constant 0 : index
    %c0_1 = arith.constant 0 : index
    %0 = vector.load %arg1[%c0, %c0_0, %c0_1] : memref<3x32x144xf32, #tpu.memory_space<vmem>>, vector<3x32x144xf32>
    %cst = arith.constant dense<0.000000e+00> : vector<3x32xf32>
    %1 = vector.multi_reduction <add>, %0, %cst [2] : vector<3x32x144xf32> to vector<3x32xf32>
    %cst_2 = arith.constant 0.0069444445 : f32
    %2 = vector.broadcast %cst_2 : f32 to vector<3x32xf32>
    %3 = arith.mulf %1, %2 : vector<3x32xf32>
    %c0_3 = arith.constant 0 : index
    %c0_4 = arith.constant 0 : index
    %4 = vector.load %arg2[%c0_3, %c0_4] : memref<32x8xf32, #tpu.memory_space<vmem>>, vector<32x8xf32>
    %cst_5 = arith.constant dense<0.000000e+00> : vector<3x8xf32>
    %5 = tpu.matmul %3, %4, %cst_5 {dimension_numbers = #tpu.dot_dimension_numbers<[1], [0], [0], [1], [0, 0, 1, 1], [], []>} : vector<3x32xf32>, vector<32x8xf32>, vector<3x8xf32> -> vector<3x8xf32>
    %c0_6 = arith.constant 0 : index
    %c0_7 = arith.constant 0 : index
    %6 = vector.load %arg3[%c0_6, %c0_7] : memref<1x8xf32, #tpu.memory_space<vmem>>, vector<1x8xf32>
    %7 = vector.broadcast %6 : vector<1x8xf32> to vector<3x8xf32>
    %8 = arith.addf %5, %7 : vector<3x8xf32>
    %cst_8 = arith.constant 0.000000e+00 : f32
    %9 = vector.broadcast %cst_8 : f32 to vector<3x8xf32>
    %10 = arith.maximumf %8, %9 : vector<3x8xf32>
    %c0_9 = arith.constant 0 : index
    %c0_10 = arith.constant 0 : index
    %11 = vector.load %arg4[%c0_9, %c0_10] : memref<8x32xf32, #tpu.memory_space<vmem>>, vector<8x32xf32>
    %cst_11 = arith.constant dense<0.000000e+00> : vector<3x32xf32>
    %12 = tpu.matmul %10, %11, %cst_11 {dimension_numbers = #tpu.dot_dimension_numbers<[1], [0], [0], [1], [0, 0, 1, 1], [], []>} : vector<3x8xf32>, vector<8x32xf32>, vector<3x32xf32> -> vector<3x32xf32>
    %c0_12 = arith.constant 0 : index
    %c0_13 = arith.constant 0 : index
    %13 = vector.load %arg5[%c0_12, %c0_13] : memref<1x32xf32, #tpu.memory_space<vmem>>, vector<1x32xf32>
    %14 = vector.broadcast %13 : vector<1x32xf32> to vector<3x32xf32>
    %15 = arith.addf %12, %14 : vector<3x32xf32>
    %16 = arith.negf %15 : vector<3x32xf32>
    %17 = math.exp %16 : vector<3x32xf32>
    %cst_14 = arith.constant 1.000000e+00 : f32
    %18 = vector.broadcast %cst_14 : f32 to vector<3x32xf32>
    %19 = arith.addf %18, %17 : vector<3x32xf32>
    %20 = arith.divf %18, %19 : vector<3x32xf32>
    %21 = vector.shape_cast %20 : vector<3x32xf32> to vector<3x32x1xf32>
    %22 = vector.broadcast %21 : vector<3x32x1xf32> to vector<3x32x144xf32>
    %23 = arith.mulf %0, %22 : vector<3x32x144xf32>
    %c0_15 = arith.constant 0 : index
    %c0_16 = arith.constant 0 : index
    %c0_17 = arith.constant 0 : index
    %24 = vector.load %arg6[%c0_15, %c0_16, %c0_17] : memref<3x32x144xf32, #tpu.memory_space<vmem>>, vector<3x32x144xf32>
    tpu.vector_store %arg6[%c0_15, %c0_16, %c0_17], %23 {strides = array<i32>} : memref<3x32x144xf32, #tpu.memory_space<vmem>>, vector<3x32x144xf32>,
    return
  }
  func.func @transform_0(%arg0: i32) -> (i32, i32, i32) {
    %c0_i32 = arith.constant 0 : i32
    %c0_i32_0 = arith.constant 0 : i32
    %c0_i32_1 = arith.constant 0 : i32
    return %arg0, %c0_i32, %c0_i32_0 : i32, i32, i32
  }
  func.func @transform_1(%arg0: i32) -> (i32, i32) {
    %c0_i32 = arith.constant 0 : i32
    %c0_i32_0 = arith.constant 0 : i32
    %c0_i32_1 = arith.constant 0 : i32
    return %c0_i32, %c0_i32_0 : i32, i32
  }
  func.func @transform_2(%arg0: i32) -> (i32, i32) {
    %c0_i32 = arith.constant 0 : i32
    %c0_i32_0 = arith.constant 0 : i32
    %c0_i32_1 = arith.constant 0 : i32
    return %c0_i32, %c0_i32_0 : i32, i32
  }
  func.func @transform_3(%arg0: i32) -> (i32, i32) {
    %c0_i32 = arith.constant 0 : i32
    %c0_i32_0 = arith.constant 0 : i32
    %c0_i32_1 = arith.constant 0 : i32
    return %c0_i32, %c0_i32_0 : i32, i32
  }
  func.func @transform_4(%arg0: i32) -> (i32, i32) {
    %c0_i32 = arith.constant 0 : i32
    %c0_i32_0 = arith.constant 0 : i32
    %c0_i32_1 = arith.constant 0 : i32
    return %c0_i32, %c0_i32_0 : i32, i32
  }
  func.func @transform_5(%arg0: i32) -> (i32, i32, i32) {
    %c0_i32 = arith.constant 0 : i32
    %c0_i32_0 = arith.constant 0 : i32
    %c0_i32_1 = arith.constant 0 : i32
    return %arg0, %c0_i32, %c0_i32_0 : i32, i32, i32
  }
}

</mosaic_0001>

<llo_original>
// kernel: se_layer.1
$region0: #{se_layer.1}
  #allocation0 [shape = 'u32[]', space=smem, size = 0x4, offset = 0x4, fixed_abs, tag = 'smem constant byte address 0x4 - core index']
  #allocation1 [shape = 'u32[72,128]{1,0:T(1,128)}', space=vmem, size = 0x9000, scoped, tag = 'internal scratch']
  %s0 = inlined_call_operand.vmem [shape: f32[5,32,144], index: 0, kind: input, shape index: {}]
  %s1 = inlined_call_operand.vmem [shape: f32[32,8], index: 1, kind: input, shape index: {}]
  %s2 = inlined_call_operand.vmem [shape: f32[1,8], index: 2, kind: input, shape index: {}]
  %s3 = inlined_call_operand.vmem [shape: f32[8,32], index: 3, kind: input, shape index: {}]
  %s4 = inlined_call_operand.vmem [shape: f32[1,32], index: 4, kind: input, shape index: {}]
  %s5 = inlined_call_operand.vmem [shape: f32[5,32,144], index: 5, kind: output, shape index: {}]
  %s6 = sld [smem:[#allocation0]]
  $region79: #{se_layer.1} parent=0
    _
  %s8 = ssub.s32 1, %s6
  %s9 = scalar_select 0, %s8, %s6
  $region1: #{se_layer.1} parent=0
    #allocation2 [shape = 'u8[196608]{0}', space=vmem, size = 0x30000, scoped, tag = 'output window, operand 0']
    loop: start=0, step=1, limit=4
    $region2: #{se_layer.1} parent=1 // loop_pre_header
      _
    $region3: #{se_layer.1} parent=1 // loop_header
      %s11 = sphi 0, %s15
      %p12 = scmp.ge.s32.totalorder %s11, 4
      %s21 = sphi 0, %s23
      %s24 = sphi 0, %s21
      %s25 = sphi 0, %s24
      %s41 = sphi 0, %s25
      %s45 = sphi 0, %s45
      %s47 = sphi 0, %s45
      %s48 = sphi 0, %s47
      %s62 = sphi 0, %s48
      %s66 = sphi 0, %s66
      %s68 = sphi 0, %s66
      %s69 = sphi 0, %s68
      %s83 = sphi 0, %s69
      %s87 = sphi 0, %s87
      %s89 = sphi 0, %s87
      %s90 = sphi 0, %s89
      %s104 = sphi 0, %s90
      %s108 = sphi 0, %s108
      %s110 = sphi 0, %s108
      %s111 = sphi 0, %s110
      %s125 = sphi 0, %s111
      %s131 = sphi 0, %s133
      %s134 = sphi 0, %s131
      %s135 = sphi 0, %s134
      %s151 = sphi 0, %s135
    $region4: #{se_layer.1} parent=1 // loop_header_branch
      %14 = sbr.rel (%p12) target = $region8
    $region5: #{se_layer.1} parent=1 // loop_body
      %s16 = ssub.s32 %s11, 1
      %s17 = ssub.s32 %s11, 2
      %s18 = sadd.s32 %s11, 1
      %s19 = ssub.s32 %s11, %s18
      %p20 = scmp.eq.s32.totalorder %s19, 0
      %s22 = sadd.s32 %s21, 1
      %s23 = scalar_select %p20, %s21, %s22
      %p26 = pneg %p20
      %p27 = scmp.eq.s32.totalorder %s11, 1
      %p28 = por %p26, %p27
      %p29 = scmp.ne.s32.totalorder %s21, %s24
      %p30 = scmp.eq.s32.totalorder %s11, 0
      %p31 = por %p29, %p30
      %p32 = scmp.ne.s32.totalorder %s21, %s24
      %p33 = scmp.eq.s32.totalorder %s16, 1
      %p34 = por %p32, %p33
      %p35 = scmp.ne.s32.totalorder %s24, %s25
      %p36 = scmp.eq.s32.totalorder %s16, 0
      %p37 = por %p35, %p36
      %p38 = scmp.ne.s32.totalorder %s24, %s25
      %p39 = scmp.eq.s32.totalorder %s17, 1
      %p40 = por %p38, %p39
      %p42 = scmp.ne.s32.totalorder %s25, %s41
      %p43 = scmp.eq.s32.totalorder %s17, 0
      %p44 = por %p42, %p43
      %s46 = sadd.s32 %s45, 1
      %p49 = scmp.eq.s32.totalorder %s11, 1
      %p50 = scmp.ne.s32.totalorder %s45, %s47
      %p51 = scmp.eq.s32.totalorder %s11, 0
      %p52 = por %p50, %p51
      %p53 = scmp.ne.s32.totalorder %s45, %s47
      %p54 = scmp.eq.s32.totalorder %s16, 1
      %p55 = por %p53, %p54
      %p56 = scmp.ne.s32.totalorder %s47, %s48
      %p57 = scmp.eq.s32.totalorder %s16, 0
      %p58 = por %p56, %p57
      %p59 = scmp.ne.s32.totalorder %s47, %s48
      %p60 = scmp.eq.s32.totalorder %s17, 1
      %p61 = por %p59, %p60
      %p63 = scmp.ne.s32.totalorder %s48, %s62
      %p64 = scmp.eq.s32.totalorder %s17, 0
      %p65 = por %p63, %p64
      %s67 = sadd.s32 %s66, 1
      %p70 = scmp.eq.s32.totalorder %s11, 1
      %p71 = scmp.ne.s32.totalorder %s66, %s68
      %p72 = scmp.eq.s32.totalorder %s11, 0
      %p73 = por %p71, %p72
      %p74 = scmp.ne.s32.totalorder %s66, %s68
      %p75 = scmp.eq.s32.totalorder %s16, 1
      %p76 = por %p74, %p75
      %p77 = scmp.ne.s32.totalorder %s68, %s69
      %p78 = scmp.eq.s32.totalorder %s16, 0
      %p79 = por %p77, %p78
      %p80 = scmp.ne.s32.totalorder %s68, %s69
      %p81 = scmp.eq.s32.totalorder %s17, 1
      %p82 = por %p80, %p81
      %p84 = scmp.ne.s32.totalorder %s69, %s83
      %p85 = scmp.eq.s32.totalorder %s17, 0
      %p86 = por %p84, %p85
      %s88 = sadd.s32 %s87, 1
      %p91 = scmp.eq.s32.totalorder %s11, 1
      %p92 = scmp.ne.s32.totalorder %s87, %s89
      %p93 = scmp.eq.s32.totalorder %s11, 0
      %p94 = por %p92, %p93
      %p95 = scmp.ne.s32.totalorder %s87, %s89
      %p96 = scmp.eq.s32.totalorder %s16, 1
      %p97 = por %p95, %p96
      %p98 = scmp.ne.s32.totalorder %s89, %s90
      %p99 = scmp.eq.s32.totalorder %s16, 0
      %p100 = por %p98, %p99
      %p101 = scmp.ne.s32.totalorder %s89, %s90
      %p102 = scmp.eq.s32.totalorder %s17, 1
      %p103 = por %p101, %p102
      %p105 = scmp.ne.s32.totalorder %s90, %s104
      %p106 = scmp.eq.s32.totalorder %s17, 0
      %p107 = por %p105, %p106
      %s109 = sadd.s32 %s108, 1
      %p112 = scmp.eq.s32.totalorder %s11, 1
      %p113 = scmp.ne.s32.totalorder %s108, %s110
      %p114 = scmp.eq.s32.totalorder %s11, 0
      %p115 = por %p113, %p114
      %p116 = scmp.ne.s32.totalorder %s108, %s110
      %p117 = scmp.eq.s32.totalorder %s16, 1
      %p118 = por %p116, %p117
      %p119 = scmp.ne.s32.totalorder %s110, %s111
      %p120 = scmp.eq.s32.totalorder %s16, 0
      %p121 = por %p119, %p120
      %p122 = scmp.ne.s32.totalorder %s110, %s111
      %p123 = scmp.eq.s32.totalorder %s17, 1
      %p124 = por %p122, %p123
      %p126 = scmp.ne.s32.totalorder %s111, %s125
      %p127 = scmp.eq.s32.totalorder %s17, 0
      %p128 = por %p126, %p127
      %s129 = ssub.s32 %s11, %s18
      %p130 = scmp.eq.s32.totalorder %s129, 0
      %s132 = sadd.s32 %s131, 1
      %s133 = scalar_select %p130, %s131, %s132
      %p136 = pneg %p130
      %p137 = scmp.eq.s32.totalorder %s11, 1
      %p138 = por %p136, %p137
      %p139 = scmp.ne.s32.totalorder %s131, %s134
      %p140 = scmp.eq.s32.totalorder %s11, 0
      %p141 = por %p139, %p140
      %p142 = scmp.ne.s32.totalorder %s131, %s134
      %p143 = scmp.eq.s32.totalorder %s16, 1
      %p144 = por %p142, %p143
      %p145 = scmp.ne.s32.totalorder %s134, %s135
      %p146 = scmp.eq.s32.totalorder %s16, 0
      %p147 = por %p145, %p146
      %p148 = scmp.ne.s32.totalorder %s134, %s135
      %p149 = scmp.eq.s32.totalorder %s17, 1
      %p150 = por %p148, %p149
      %p152 = scmp.ne.s32.totalorder %s135, %s151
      %p153 = scmp.eq.s32.totalorder %s17, 0
      %p154 = por %p152, %p153
      %p155 = scmp.le.s32.totalorder 1, %s11
      %p156 = scmp.lt.s32.totalorder %s11, 3
      %p157 = pnand %p155, %p156
      %p158 = pneg %p157
      // Predicated region
      $region9: #{se_layer.1} parent=5 // pred_check
        _
      $region10: #{se_layer.1} parent=5 // pred_check_branch
        %160 = sbr.rel (%p157) target = $region12
      $region11: #{se_layer.1} parent=5 // pred_region
        %s161 = ssub.s32 %s11, 1
        // Predicated region
        $region13: #{se_layer.1} parent=11 // pred_check
          %p162 = pneg %p58
        $region14: #{se_layer.1} parent=11 // pred_check_branch
          %164 = sbr.rel (%p162) target = $region16
        $region15: #{se_layer.1} parent=11 // pred_region
          _
        $region16: #{se_layer.1} parent=11 // pred_fallthru
          _
        // Predicated region
        $region17: #{se_layer.1} parent=11 // pred_check
          %p165 = pneg %p79
        $region18: #{se_layer.1} parent=11 // pred_check_branch
          %167 = sbr.rel (%p165) target = $region20
        $region19: #{se_layer.1} parent=11 // pred_region
          _
        $region20: #{se_layer.1} parent=11 // pred_fallthru
          _
        // Predicated region
        $region21: #{se_layer.1} parent=11 // pred_check
          %p168 = pneg %p100
        $region22: #{se_layer.1} parent=11 // pred_check_branch
          %170 = sbr.rel (%p168) target = $region24
        $region23: #{se_layer.1} parent=11 // pred_region
          _
        $region24: #{se_layer.1} parent=11 // pred_fallthru
          _
        // Predicated region
        $region25: #{se_layer.1} parent=11 // pred_check
          %p171 = pneg %p121
        $region26: #{se_layer.1} parent=11 // pred_check_branch
          %173 = sbr.rel (%p171) target = $region28
        $region27: #{se_layer.1} parent=11 // pred_region
          _
        $region28: #{se_layer.1} parent=11 // pred_fallthru
          _
      $region12: #{se_layer.1} parent=5 // pred_fallthru
        _
      %p174 = scmp.lt.s32.totalorder %s11, 2
      // Predicated region
      $region29: #{se_layer.1} parent=5 // pred_check
        %p175 = pneg %p174
      $region30: #{se_layer.1} parent=5 // pred_check_branch
        %177 = sbr.rel (%p175) target = $region32
      $region31: #{se_layer.1} parent=5 // pred_region
        // Predicated region
        $region33: #{se_layer.1} parent=31 // pred_check
          %p178 = pneg %p31
        $region34: #{se_layer.1} parent=31 // pred_check_branch
          %180 = sbr.rel (%p178) target = $region36
        $region35: #{se_layer.1} parent=31 // pred_region
          %s181 = smul.u32 3, %s11
          %s182 = ssub.s32 5, %s181
          %p183 = scmp.lt.s32.totalorder %s182, 3
          %s184 = scalar_select %p183, %s182, 3
          %s185 = smul.u32 8, %s184
          %s186 = smul.u32 %s185, 4
          %s187 = smul.u32 %s186, 2
          %p188 = scmp.lt.s32.totalorder %s181, 4
          %s189 = scalar_select %p188, %s181, 4
          %s190 = smul.addr %s189, 8
          %s191 = smul.addr %s190, 8
          %s192 = scalar_lea.vmem %s0, %s191
          %s193 = smul.u32 3, %s11
          %s194 = ssub.s32 5, %s193
          %p195 = scmp.lt.s32.totalorder %s194, 3
          %s196 = scalar_select %p195, %s194, 3
          %s197 = smul.u32 8, %s196
          %s198 = smul.u32 %s197, 4
          %s199 = smul.u32 %s198, 2
        $region36: #{se_layer.1} parent=31 // pred_fallthru
          _
      $region32: #{se_layer.1} parent=5 // pred_fallthru
        _
      %p200 = scmp.le.s32.totalorder 1, %s11
      %p201 = scmp.lt.s32.totalorder %s11, 3
      %p202 = pnand %p200, %p201
      %p203 = pneg %p202
      // Predicated region
      $region37: #{se_layer.1} parent=5 // pred_check
        _
      $region38: #{se_layer.1} parent=5 // pred_check_branch
        %205 = sbr.rel (%p202) target = $region40
      $region39: #{se_layer.1} parent=5 // pred_region
        %s206 = ssub.s32 %s11, 1
        %s207 = smul.u32 3, %s16
        %s208 = ssub.s32 5, %s207
        %p209 = scmp.lt.s32.totalorder %s208, 3
        %s210 = scalar_select %p209, %s208, 3
        %s211 = smul.u32 8, %s210
        %s212 = smul.u32 %s211, 4
        %s213 = smul.u32 %s212, 2
        %p214 = scmp.lt.s32.totalorder %s207, 4
        %s215 = scalar_select %p214, %s207, 4
        %s216 = smul.addr %s215, 8
        %s217 = smul.addr %s216, 8
        %s218 = scalar_lea.vmem %s0, %s217
        %p219 = pneg %p37
        %p220 = pneg %p34
        %p221 = pneg %p58
        %p222 = pneg %p55
        %p223 = pneg %p79
        %p224 = pneg %p76
        %p225 = pneg %p100
        %p226 = pneg %p97
        %p227 = pneg %p121
        %p228 = pneg %p118
        %p229 = pneg %p147
        %p230 = pneg %p144
        %s231 = sand.u32 %s134, 1
        %s232 = sand.u32 %s134, 1
        %s233 = smul.addr %s232, 192
        %s234 = scalar_lea.vmem [#allocation2], %s233
        %s235 = smul.u32 3, %s16
        %s236 = ssub.s32 5, %s235
        %p237 = scmp.lt.s32.totalorder %s236, 3
        %s238 = scalar_select %p237, %s236, 3
        %s239 = smul.u32 8, %s238
        %s240 = smul.u32 %s239, 4
        %s241 = smul.u32 %s240, 2
        %p242 = scmp.lt.s32.totalorder %s235, 4
        %s243 = scalar_select %p242, %s235, 4
        %s244 = smul.addr %s243, 8
        %s245 = smul.addr %s244, 8
        %s246 = scalar_lea.vmem %s0, %s245
        %s247 = smul.u32 3, %s16
        %s248 = ssub.s32 5, %s247
        %p249 = scmp.lt.s32.totalorder %s248, 3
        %s250 = scalar_select %p249, %s248, 3
        %s251 = smul.u32 8, %s250
        %s252 = smul.u32 %s251, 4
        %s253 = smul.u32 %s252, 2
        %s254 = smul.u32 3, %s16
        %s255 = ssub.s32 5, %s254
        %p256 = scmp.lt.s32.totalorder %s255, 3
        %s257 = scalar_select %p256, %s255, 3
        %s258 = smul.u32 8, %s257
        %s259 = smul.u32 %s258, 4
        %s260 = smul.u32 %s259, 2
        %v261 = vld [vmem:[%s246] sm:$0xff]
        %v262 = vld [vmem:[%s246 + $0x8] sm:$0xff]
        %v263 = vld [vmem:[%s246 + $0x10] sm:$0xff]
        %v264 = vld [vmem:[%s246 + $0x18] sm:$0xff]
        %v265 = vld [vmem:[%s246 + $0x20] sm:$0xff]
        %v266 = vld [vmem:[%s246 + $0x28] sm:$0xff]
        %v267 = vld [vmem:[%s246 + $0x30] sm:$0xff]
        %v268 = vld [vmem:[%s246 + $0x38] sm:$0xff]
        %v269 = vld [vmem:[%s246 + $0x40] sm:$0xff]
        %v270 = vld [vmem:[%s246 + $0x48] sm:$0xff]
        %v271 = vld [vmem:[%s246 + $0x50] sm:$0xff]
        %v272 = vld [vmem:[%s246 + $0x58] sm:$0xff]
        %v273 = vld [vmem:[%s246 + $0x60] sm:$0xff]
        %v274 = vld [vmem:[%s246 + $0x68] sm:$0xff]
        %v275 = vld [vmem:[%s246 + $0x70] sm:$0xff]
        %v276 = vld [vmem:[%s246 + $0x78] sm:$0xff]
        %v277 = vld [vmem:[%s246 + $0x80] sm:$0xff]
        %v278 = vld [vmem:[%s246 + $0x88] sm:$0xff]
        %v279 = vld [vmem:[%s246 + $0x90] sm:$0xff]
        %v280 = vld [vmem:[%s246 + $0x98] sm:$0xff]
        %v281 = vld [vmem:[%s246 + $0xa0] sm:$0xff]
        %v282 = vld [vmem:[%s246 + $0xa8] sm:$0xff]
        %v283 = vld [vmem:[%s246 + $0xb0] sm:$0xff]
        %v284 = vld [vmem:[%s246 + $0xb8] sm:$0xff]
        %vm285 = vcmask 130048
        %v286 = vsel %vm285, %v262, 0.0
        %v287 = vadd.f32 %v261, %v286
        %288 = vadd.xlane.f32.xlu0 %v287
        %v289 = vpop.xlane.xlu0 %288
        %v290 = vsel %vm285, %v264, 0.0
        %v291 = vadd.f32 %v263, %v290
        %292 = vadd.xlane.f32.xlu0 %v291
        %v293 = vpop.xlane.xlu0 %292
        %v294 = vsel %vm285, %v266, 0.0
        %v295 = vadd.f32 %v265, %v294
        %296 = vadd.xlane.f32.xlu0 %v295
        %v297 = vpop.xlane.xlu0 %296
        %v298 = vsel %vm285, %v268, 0.0
        %v299 = vadd.f32 %v267, %v298
        %300 = vadd.xlane.f32.xlu0 %v299
        %v301 = vpop.xlane.xlu0 %300
        %v302 = vsel %vm285, %v270, 0.0
        %v303 = vadd.f32 %v269, %v302
        %304 = vadd.xlane.f32.xlu0 %v303
        %v305 = vpop.xlane.xlu0 %304
        %v306 = vsel %vm285, %v272, 0.0
        %v307 = vadd.f32 %v271, %v306
        %308 = vadd.xlane.f32.xlu0 %v307
        %v309 = vpop.xlane.xlu0 %308
        %v310 = vsel %vm285, %v274, 0.0
        %v311 = vadd.f32 %v273, %v310
        %312 = vadd.xlane.f32.xlu0 %v311
        %v313 = vpop.xlane.xlu0 %312
        %v314 = vsel %vm285, %v276, 0.0
        %v315 = vadd.f32 %v275, %v314
        %316 = vadd.xlane.f32.xlu0 %v315
        %v317 = vpop.xlane.xlu0 %316
        %v318 = vsel %vm285, %v278, 0.0
        %v319 = vadd.f32 %v277, %v318
        %320 = vadd.xlane.f32.xlu0 %v319
        %v321 = vpop.xlane.xlu0 %320
        %v322 = vsel %vm285, %v280, 0.0
        %v323 = vadd.f32 %v279, %v322
        %324 = vadd.xlane.f32.xlu0 %v323
        %v325 = vpop.xlane.xlu0 %324
        %v326 = vsel %vm285, %v282, 0.0
        %v327 = vadd.f32 %v281, %v326
        %328 = vadd.xlane.f32.xlu0 %v327
        %v329 = vpop.xlane.xlu0 %328
        %v330 = vsel %vm285, %v284, 0.0
        %v331 = vadd.f32 %v283, %v330
        %332 = vadd.xlane.f32.xlu0 %v331
        %v333 = vpop.xlane.xlu0 %332
        %v334 = vmul.f32 %v289, 0.0069444445
        %v335 = vmul.f32 %v293, 0.0069444445
        %v336 = vmul.f32 %v297, 0.0069444445
        %v337 = vmul.f32 %v301, 0.0069444445
        %v338 = vmul.f32 %v305, 0.0069444445
        %v339 = vmul.f32 %v309, 0.0069444445
        %v340 = vmul.f32 %v313, 0.0069444445
        %v341 = vmul.f32 %v317, 0.0069444445
        %v342 = vmul.f32 %v321, 0.0069444445
        %v343 = vmul.f32 %v325, 0.0069444445
        %v344 = vmul.f32 %v329, 0.0069444445
        %v345 = vmul.f32 %v333, 0.0069444445
        %v346 = vld [vmem:[%s1] sm:$0xff]
        %v347 = vld [vmem:[%s1 + $0x8] sm:$0xff]
        %v348 = vld [vmem:[%s1 + $0x10] sm:$0xff]
        %v349 = vld [vmem:[%s1 + $0x18] sm:$0xff]
        %v350 = vld [vmem:[%s2] sm:$0x1]
        %v352 = vperm.slane %v350, 0
        %v366 = vlaneseq
        %v367 = vand.u32 %v366, 127
        %v368 = vperm.slane %v334, %v367
        %v369 = vadd.s32 %v367, 4294967288
        %v370 = vperm.slane %v335, %v369
        %vm371 = vcmask 130112
        %v372 = vsel %vm371, %v370, %v368
        %v373 = vadd.s32 %v367, 4294967280
        %v374 = vperm.slane %v336, %v373
        %vm375 = vcmask 195712
        %v376 = vsel %vm375, %v374, %v372
        %v377 = vadd.s32 %v367, 4294967272
        %v378 = vperm.slane %v337, %v377
        %vm379 = vcmask 261312
        %v380 = vsel %vm379, %v378, %v376
        %v381 = vperm.slane %v338, %v367
        %v382 = vperm.slane %v339, %v369
        %v383 = vsel %vm371, %v382, %v381
        %v384 = vperm.slane %v340, %v373
        %v385 = vsel %vm375, %v384, %v383
        %v386 = vperm.slane %v341, %v377
        %v387 = vsel %vm379, %v386, %v385
        %v388 = vperm.slane %v342, %v367
        %v389 = vperm.slane %v343, %v369
        %v390 = vsel %vm371, %v389, %v388
        %v391 = vperm.slane %v344, %v373
        %v392 = vsel %vm375, %v391, %v390
        %v393 = vperm.slane %v345, %v377
        %v394 = vsel %vm379, %v393, %v392
        %vm395 = vcmask 1041409
        %v396 = vsel %vm395, %v387, %v380
        %vm397 = vcmask 1042434
        %v398 = vsel %vm397, %v394, %v396
        %vm399 = vcmask 261120
        %v400 = vsel %vm399, %v398, 0
        %402 = vmatpush.msra.mxu0 0.0
        %403 = vmatpush.msra.mxu0 0.0
        %404 = vmatpush.msra.mxu0 0.0
        %405 = vmatpush.msra.mxu0 0.0
        %406 = vmatpush.msra.mxu0 0.0
        %407 = vmatpush.msra.mxu0 0.0
        %408 = vmatpush.msra.mxu0 0.0
        %409 = vmatpush.msra.mxu0 0.0
        %410 = vmatpush.msra.mxu0 0.0
        %411 = vmatpush.msra.mxu0 0.0
        %412 = vmatpush.msra.mxu0 0.0
        %413 = vmatpush.msra.mxu0 0.0
        %414 = vmatpush.msra.mxu0 %v349
        %415 = vmatpush.msra.mxu0 %v348
        %416 = vmatpush.msra.mxu0 %v347
        %417 = vmatpush.msra.mxu0 %v346
        %418 = vmatmul.f32.gmra.mxu0 %v400
        %v419 = vpop.f32.mrf.mxu0
        %v420 = vadd.f32 %v352, %v419
        %421 = vdwg.mxu0
        %v422 = vmax.f32 %v420, 0.0
        %v423 = vld [vmem:[%s3] sm:$0xff]
        %v424 = vld [vmem:[%s4] sm:$0x1]
        %v426 = vperm.slane %v424, 0
        %vm428 = vcmask 64512
        %v430 = vsel %vm428, %v422, 0
        %432 = vmatpush.msra.mxu0 0.0
        %433 = vmatpush.msra.mxu0 0.0
        %434 = vmatpush.msra.mxu0 0.0
        %435 = vmatpush.msra.mxu0 0.0
        %436 = vmatpush.msra.mxu0 0.0
        %437 = vmatpush.msra.mxu0 0.0
        %438 = vmatpush.msra.mxu0 0.0
        %439 = vmatpush.msra.mxu0 0.0
        %440 = vmatpush.msra.mxu0 0.0
        %441 = vmatpush.msra.mxu0 0.0
        %442 = vmatpush.msra.mxu0 0.0
        %443 = vmatpush.msra.mxu0 0.0
        %444 = vmatpush.msra.mxu0 0.0
        %445 = vmatpush.msra.mxu0 0.0
        %446 = vmatpush.msra.mxu0 0.0
        %447 = vmatpush.msra.mxu0 %v423
        %448 = vmatmul.f32.gmra.mxu0 %v430
        %v449 = vpop.f32.mrf.mxu0
        %v450 = vadd.f32 %v426, %v449
        %451 = vdwg.mxu0
        %v452 = vxor.u32 %v450, 2147483648
        %v453 = vmul.f32 %v452, 1.442695
        %v454 = vpow.pop %v453
        %v455 = vadd.f32 %v454, 1.0
        %v456 = vrcp.pop %v455
        %v457 = vmul.f32 %v455, %v456
        %v458 = vsub.f32 1.0, %v457
        %v459 = vmul.f32 %v456, %v458
        %v460 = vadd.f32 %v456, %v459
        %vm461 = vweird.f32 %v455
        %vm462 = vweird.f32 %v456
        %vm463 = vmor %vm461, %vm462
        %v464 = vsel %vm463, %v456, %v460
        %v465 = vand.u32 2147483647, %v455
        %vm466 = vcmp.eq.f32.partialorder %v465, 8.507059e+37
        %v467 = vand.u32 %v455, 2147483648
        %v468 = vor.u32 1.1754944e-38, %v467
        %v469 = vsel %vm466, %v468, %v464
        %v470 = vmul.f32 1.0, %v469
        %v471 = vperm.slane %v470, 0
        %v472 = vlaneseq
        %v473 = vshrl.u32 %v472, 7
        %475 = vset.pattern.permute.xlu0 %v473
        %476 = vperm.xlu0 %475, %v471
        %v477 = vpop.permute.xlu0 %476
        %v478 = vlaneseq
        %v479 = vshrl.u32 %v478, 7
        %v480 = vadd.s32 %v479, 8
        %481 = vset.pattern.permute.xlu0 %v480
        %482 = vperm.xlu0 %481, %v471
        %v483 = vpop.permute.xlu0 %482
        %v484 = vlaneseq
        %v485 = vshrl.u32 %v484, 7
        %v486 = vadd.s32 %v485, 16
        %487 = vset.pattern.permute.xlu0 %v486
        %488 = vperm.xlu0 %487, %v471
        %v489 = vpop.permute.xlu0 %488
        %v490 = vlaneseq
        %v491 = vshrl.u32 %v490, 7
        %v492 = vadd.s32 %v491, 24
        %493 = vset.pattern.permute.xlu0 %v492
        %494 = vperm.xlu0 %493, %v471
        %v495 = vpop.permute.xlu0 %494
        %v496 = vperm.slane %v470, 1
        %v497 = vlaneseq
        %v498 = vshrl.u32 %v497, 7
        %500 = vset.pattern.permute.xlu0 %v498
        %501 = vperm.xlu0 %500, %v496
        %v502 = vpop.permute.xlu0 %501
        %v503 = vlaneseq
        %v504 = vshrl.u32 %v503, 7
        %v505 = vadd.s32 %v504, 8
        %506 = vset.pattern.permute.xlu0 %v505
        %507 = vperm.xlu0 %506, %v496
        %v508 = vpop.permute.xlu0 %507
        %v509 = vlaneseq
        %v510 = vshrl.u32 %v509, 7
        %v511 = vadd.s32 %v510, 16
        %512 = vset.pattern.permute.xlu0 %v511
        %513 = vperm.xlu0 %512, %v496
        %v514 = vpop.permute.xlu0 %513
        %v515 = vlaneseq
        %v516 = vshrl.u32 %v515, 7
        %v517 = vadd.s32 %v516, 24
        %518 = vset.pattern.permute.xlu0 %v517
        %519 = vperm.xlu0 %518, %v496
        %v520 = vpop.permute.xlu0 %519
        %v521 = vperm.slane %v470, 2
        %v522 = vlaneseq
        %v523 = vshrl.u32 %v522, 7
        %525 = vset.pattern.permute.xlu0 %v523
        %526 = vperm.xlu0 %525, %v521
        %v527 = vpop.permute.xlu0 %526
        %v528 = vlaneseq
        %v529 = vshrl.u32 %v528, 7
        %v530 = vadd.s32 %v529, 8
        %531 = vset.pattern.permute.xlu0 %v530
        %532 = vperm.xlu0 %531, %v521
        %v533 = vpop.permute.xlu0 %532
        %v534 = vlaneseq
        %v535 = vshrl.u32 %v534, 7
        %v536 = vadd.s32 %v535, 16
        %537 = vset.pattern.permute.xlu0 %v536
        %538 = vperm.xlu0 %537, %v521
        %v539 = vpop.permute.xlu0 %538
        %v540 = vlaneseq
        %v541 = vshrl.u32 %v540, 7
        %v542 = vadd.s32 %v541, 24
        %543 = vset.pattern.permute.xlu0 %v542
        %544 = vperm.xlu0 %543, %v521
        %v545 = vpop.permute.xlu0 %544
        %v546 = vmul.f32 %v261, %v477
        %v547 = vmul.f32 %v262, %v477
        %v548 = vmul.f32 %v263, %v483
        %v549 = vmul.f32 %v264, %v483
        %v550 = vmul.f32 %v265, %v489
        %v551 = vmul.f32 %v266, %v489
        %v552 = vmul.f32 %v267, %v495
        %v553 = vmul.f32 %v268, %v495
        %v554 = vmul.f32 %v269, %v502
        %v555 = vmul.f32 %v270, %v502
        %v556 = vmul.f32 %v271, %v508
        %v557 = vmul.f32 %v272, %v508
        %v558 = vmul.f32 %v273, %v514
        %v559 = vmul.f32 %v274, %v514
        %v560 = vmul.f32 %v275, %v520
        %v561 = vmul.f32 %v276, %v520
        %v562 = vmul.f32 %v277, %v527
        %v563 = vmul.f32 %v278, %v527
        %v564 = vmul.f32 %v279, %v533
        %v565 = vmul.f32 %v280, %v533
        %v566 = vmul.f32 %v281, %v539
        %v567 = vmul.f32 %v282, %v539
        %v568 = vmul.f32 %v283, %v545
        %v569 = vmul.f32 %v284, %v545
        %570 = vst [vmem:[%s234] sm:$0xff] %v546
        %571 = vst.msk [vmem:[%s234 + $0x8] sm:$0xff] %vm285, %v547
        %572 = vst [vmem:[%s234 + $0x10] sm:$0xff] %v548
        %573 = vst.msk [vmem:[%s234 + $0x18] sm:$0xff] %vm285, %v549
        %574 = vst [vmem:[%s234 + $0x20] sm:$0xff] %v550
        %575 = vst.msk [vmem:[%s234 + $0x28] sm:$0xff] %vm285, %v551
        %576 = vst [vmem:[%s234 + $0x30] sm:$0xff] %v552
        %577 = vst.msk [vmem:[%s234 + $0x38] sm:$0xff] %vm285, %v553
        %578 = vst [vmem:[%s234 + $0x40] sm:$0xff] %v554
        %579 = vst.msk [vmem:[%s234 + $0x48] sm:$0xff] %vm285, %v555
        %580 = vst [vmem:[%s234 + $0x50] sm:$0xff] %v556
        %581 = vst.msk [vmem:[%s234 + $0x58] sm:$0xff] %vm285, %v557
        %582 = vst [vmem:[%s234 + $0x60] sm:$0xff] %v558
        %583 = vst.msk [vmem:[%s234 + $0x68] sm:$0xff] %vm285, %v559
        %584 = vst [vmem:[%s234 + $0x70] sm:$0xff] %v560
        %585 = vst.msk [vmem:[%s234 + $0x78] sm:$0xff] %vm285, %v561
        %586 = vst [vmem:[%s234 + $0x80] sm:$0xff] %v562
        %587 = vst.msk [vmem:[%s234 + $0x88] sm:$0xff] %vm285, %v563
        %588 = vst [vmem:[%s234 + $0x90] sm:$0xff] %v564
        %589 = vst.msk [vmem:[%s234 + $0x98] sm:$0xff] %vm285, %v565
        %590 = vst [vmem:[%s234 + $0xa0] sm:$0xff] %v566
        %591 = vst.msk [vmem:[%s234 + $0xa8] sm:$0xff] %vm285, %v567
        %592 = vst [vmem:[%s234 + $0xb0] sm:$0xff] %v568
        %593 = vst.msk [vmem:[%s234 + $0xb8] sm:$0xff] %vm285, %v569
        %s594 = sand.u32 %s134, 1
        %s595 = sand.u32 %s134, 1
        %s596 = smul.addr %s595, 192
        %s597 = scalar_lea.vmem [#allocation2], %s596
        // Predicated region
        $region41: #{se_layer.1} parent=39 // pred_check
          %p598 = pneg %p144
        $region42: #{se_layer.1} parent=39 // pred_check_branch
          %600 = sbr.rel (%p598) target = $region44
        $region43: #{se_layer.1} parent=39 // pred_region
          %s601 = smul.u32 3, %s16
          %s602 = ssub.s32 5, %s601
          %p603 = scmp.lt.s32.totalorder %s602, 3
          %s604 = scalar_select %p603, %s602, 3
          %s605 = smul.u32 8, %s604
          %s606 = smul.u32 %s605, 4
          %s607 = smul.u32 %s606, 2
          %p608 = scmp.ne.s32.totalorder 0, %s607
          %s609 = smul.addr %s601, 8
          %s610 = smul.addr %s609, 8
          %s611 = scalar_lea.vmem %s5, %s610
          %s612 = smul.u32 %s604, 4
          // Predicated region
          $region45: #{se_layer.1} parent=43 // pred_check
            %p613 = pneg %p608
          $region46: #{se_layer.1} parent=43 // pred_check_branch
            %615 = sbr.rel (%p613) target = $region48
          $region47: #{se_layer.1} parent=43 // pred_region
            // Predicated region
            $region49: #{se_layer.1} parent=47 // pred_check
              _
            $region50: #{se_layer.1} parent=47 // pred_check_branch
              %617 = sbr.rel (0) target = $region52
            $region51: #{se_layer.1} parent=47 // pred_region
              %s618 = sdiv.u32.pop %s612, 12
              %s619 = srem.u32.pop %s612, 12
              // While loop
              $region53: #{se_layer.1} parent=51 // loop_pre_header
                _
              $region54: #{se_layer.1} parent=51 // loop_header
                %s621 = sphi 0, %s623
                %p622 = scmp.ge.s32.totalorder %s621, %s618
                %s626 = sphi 0, %s679
                %s627 = sphi %s597, %s682
                %s628 = sphi %s611, %s683
              $region55: #{se_layer.1} parent=51 // loop_header_branch
                %625 = sbr.rel (%p622) target = $region59
              $region56: #{se_layer.1} parent=51 // loop_body
                %v629 = vld [vmem:[%s627] sm:$0xff]
                %630 = vst [vmem:[%s628] sm:$0xff] %v629
                %v631 = vld [vmem:[%s627 + $0x10] sm:$0xff]
                %632 = vst [vmem:[%s628 + $0x10] sm:$0xff] %v631
                %v633 = vld [vmem:[%s627 + $0x20] sm:$0xff]
                %634 = vst [vmem:[%s628 + $0x20] sm:$0xff] %v633
                %v635 = vld [vmem:[%s627 + $0x30] sm:$0xff]
                %636 = vst [vmem:[%s628 + $0x30] sm:$0xff] %v635
                %v637 = vld [vmem:[%s627 + $0x40] sm:$0xff]
                %638 = vst [vmem:[%s628 + $0x40] sm:$0xff] %v637
                %v639 = vld [vmem:[%s627 + $0x50] sm:$0xff]
                %640 = vst [vmem:[%s628 + $0x50] sm:$0xff] %v639
                %v641 = vld [vmem:[%s627 + $0x60] sm:$0xff]
                %642 = vst [vmem:[%s628 + $0x60] sm:$0xff] %v641
                %v643 = vld [vmem:[%s627 + $0x70] sm:$0xff]
                %644 = vst [vmem:[%s628 + $0x70] sm:$0xff] %v643
                %v645 = vld [vmem:[%s627 + $0x80] sm:$0xff]
                %646 = vst [vmem:[%s628 + $0x80] sm:$0xff] %v645
                %v647 = vld [vmem:[%s627 + $0x90] sm:$0xff]
                %648 = vst [vmem:[%s628 + $0x90] sm:$0xff] %v647
                %v649 = vld [vmem:[%s627 + $0xa0] sm:$0xff]
                %650 = vst [vmem:[%s628 + $0xa0] sm:$0xff] %v649
                %v651 = vld [vmem:[%s627 + $0xb0] sm:$0xff]
                %652 = vst [vmem:[%s628 + $0xb0] sm:$0xff] %v651
                %v653 = vld [vmem:[%s627 + $0x8] sm:$0xff]
                %654 = vst [vmem:[%s628 + $0x8] sm:$0xff] %v653
                %v655 = vld [vmem:[%s627 + $0x18] sm:$0xff]
                %656 = vst [vmem:[%s628 + $0x18] sm:$0xff] %v655
                %v657 = vld [vmem:[%s627 + $0x28] sm:$0xff]
                %658 = vst [vmem:[%s628 + $0x28] sm:$0xff] %v657
                %v659 = vld [vmem:[%s627 + $0x38] sm:$0xff]
                %660 = vst [vmem:[%s628 + $0x38] sm:$0xff] %v659
                %v661 = vld [vmem:[%s627 + $0x48] sm:$0xff]
                %662 = vst [vmem:[%s628 + $0x48] sm:$0xff] %v661
                %v663 = vld [vmem:[%s627 + $0x58] sm:$0xff]
                %664 = vst [vmem:[%s628 + $0x58] sm:$0xff] %v663
                %v665 = vld [vmem:[%s627 + $0x68] sm:$0xff]
                %666 = vst [vmem:[%s628 + $0x68] sm:$0xff] %v665
                %v667 = vld [vmem:[%s627 + $0x78] sm:$0xff]
                %668 = vst [vmem:[%s628 + $0x78] sm:$0xff] %v667
                %v669 = vld [vmem:[%s627 + $0x88] sm:$0xff]
                %670 = vst [vmem:[%s628 + $0x88] sm:$0xff] %v669
                %v671 = vld [vmem:[%s627 + $0x98] sm:$0xff]
                %672 = vst [vmem:[%s628 + $0x98] sm:$0xff] %v671
                %v673 = vld [vmem:[%s627 + $0xa8] sm:$0xff]
                %674 = vst [vmem:[%s628 + $0xa8] sm:$0xff] %v673
                %v675 = vld [vmem:[%s627 + $0xb8] sm:$0xff]
                %676 = vst [vmem:[%s628 + $0xb8] sm:$0xff] %v675
                %s677 = sadd.s32 1, %s626
                %p678 = scmp.ge.s32.totalorder %s677, %s618
                %s679 = scalar_select %p678, 0, %s677
                %s680 = smul.u32 %s679, 192
                %s681 = smul.u32 %s679, 192
                %s682 = scalar_lea.vmem %s597, %s680 [#allocation2]
                %s683 = scalar_lea.vmem %s611, %s681
              $region57: #{se_layer.1} parent=51 // loop_footer
                %s623 = sadd.s32 %s621, 1
              $region58: #{se_layer.1} parent=51 // loop_footer_branch
                %620 = sbr.rel target = $region54
              $region59: #{se_layer.1} parent=51 // loop_exit
                _
              %s684 = sdiv.u32.pop %s612, 12
              %s685 = srem.u32.pop %s612, 12
              %s686 = smul.u32 %s684, 12
              %s687 = smul.u32 16, %s686
              %s688 = scalar_lea.vmem %s597, %s687 [#allocation2]
              %s689 = smul.u32 16, %s686
              %s690 = scalar_lea.vmem %s611, %s689
              // While loop
              $region60: #{se_layer.1} parent=51 // loop_pre_header
                _
              $region61: #{se_layer.1} parent=51 // loop_header
                %s692 = sphi 0, %s694
                %p693 = scmp.ge.s32.totalorder %s692, %s685
                %s697 = sphi 0, %s706
                %s698 = sphi %s688, %s709
                %s699 = sphi %s690, %s710
              $region62: #{se_layer.1} parent=51 // loop_header_branch
                %696 = sbr.rel (%p693) target = $region66
              $region63: #{se_layer.1} parent=51 // loop_body
                %v700 = vld [vmem:[%s698] sm:$0xff]
                %701 = vst [vmem:[%s699] sm:$0xff] %v700
                %v702 = vld [vmem:[%s698 + $0x8] sm:$0xff]
                %703 = vst [vmem:[%s699 + $0x8] sm:$0xff] %v702
                %s704 = sadd.s32 1, %s697
                %p705 = scmp.ge.s32.totalorder %s704, %s685
                %s706 = scalar_select %p705, 0, %s704
                %s707 = smul.u32 %s706, 16
                %s708 = smul.u32 %s706, 16
                %s709 = scalar_lea.vmem %s688, %s707 [#allocation2]
                %s710 = scalar_lea.vmem %s690, %s708
              $region64: #{se_layer.1} parent=51 // loop_footer
                %s694 = sadd.s32 %s692, 1
              $region65: #{se_layer.1} parent=51 // loop_footer_branch
                %691 = sbr.rel target = $region61
              $region66: #{se_layer.1} parent=51 // loop_exit
                _
            $region52: #{se_layer.1} parent=47 // pred_fallthru
              _
            // Predicated region
            $region67: #{se_layer.1} parent=47 // pred_check
              _
            $region68: #{se_layer.1} parent=47 // pred_check_branch
              %712 = sbr.rel target = $region70
            $region69: #{se_layer.1} parent=47 // pred_region
              _
            $region70: #{se_layer.1} parent=47 // pred_fallthru
              _
          $region48: #{se_layer.1} parent=43 // pred_fallthru
            _
          %713 = vnop
        $region44: #{se_layer.1} parent=39 // pred_fallthru
          _
      $region40: #{se_layer.1} parent=5 // pred_fallthru
        _
      %p714 = scmp.le.s32.totalorder 2, %s11
      // Predicated region
      $region71: #{se_layer.1} parent=5 // pred_check
        %p715 = pneg %p714
      $region72: #{se_layer.1} parent=5 // pred_check_branch
        %717 = sbr.rel (%p715) target = $region74
      $region73: #{se_layer.1} parent=5 // pred_region
        %s718 = ssub.s32 %s11, 2
        // Predicated region
        $region75: #{se_layer.1} parent=73 // pred_check
          %p719 = pneg %p150
        $region76: #{se_layer.1} parent=73 // pred_check_branch
          %721 = sbr.rel (%p719) target = $region78
        $region77: #{se_layer.1} parent=73 // pred_region
          %s722 = sand.u32 %s135, 1
          %s723 = sand.u32 %s135, 1
          %s724 = smul.addr %s723, 192
          %s725 = scalar_lea.vmem [#allocation2], %s724
        $region78: #{se_layer.1} parent=73 // pred_fallthru
          _
      $region74: #{se_layer.1} parent=5 // pred_fallthru
        _
    $region6: #{se_layer.1} parent=1 // loop_footer
      %s15 = sadd.s32 1, %s11
    $region7: #{se_layer.1} parent=1 // loop_footer_branch
      %10 = sbr.rel target = $region3
    $region8: #{se_layer.1} parent=1 // loop_exit
      _

</llo_original>
